<compile_context>
chip_gen: v7x
topology: tpu7x:2x2x1
jax: 0.10.0
libtpu: 0.0.40
codegen_flags: <defaults>
</compile_context>

<pallas_src>
import functools

import jax
import jax.numpy as jnp
from jax.experimental import pallas as pl
from jax.experimental.pallas import tpu as pltpu

# Model dims from the dacon-ddarung task: 9 input features, 1 regression output.
INPUT_DIM = 9
H1, H2, H3 = 19, 97, 9
OUTPUT_DIM = 1

LANE = 128      # TPU lane width (last dim of a vreg)
SUBLANE = 8     # TPU sublane count (second-to-last dim of a vreg)


def _round_up(n, m):
    return ((n + m - 1) // m) * m


def _pad2d(a, rows, cols):
    r, c = a.shape
    return jnp.pad(a, ((0, rows - r), (0, cols - c)))


def mlp_kernel(x_ref, w1_ref, b1_ref, w2_ref, b2_ref,
               w3_ref, b3_ref, w4_ref, b4_ref, o_ref):
    # Whole 4-layer MLP runs in one kernel invocation per batch tile.
    # All operands are padded to 128 lanes -> dense vreg loads, dense MXU passes.
    x = x_ref[...]
    # linear1 (no activation, matching the PyTorch forward)
    h = jnp.dot(x, w1_ref[...], preferred_element_type=jnp.float32) + b1_ref[...]
    # linear2 + relu
    h = jnp.dot(h, w2_ref[...], preferred_element_type=jnp.float32) + b2_ref[...]
    h = jnp.maximum(h, 0.0)
    # linear3 + relu
    h = jnp.dot(h, w3_ref[...], preferred_element_type=jnp.float32) + b3_ref[...]
    h = jnp.maximum(h, 0.0)
    # linear4 + relu
    h = jnp.dot(h, w4_ref[...], preferred_element_type=jnp.float32) + b4_ref[...]
    h = jnp.maximum(h, 0.0)
    o_ref[...] = h.astype(o_ref.dtype)


@functools.partial(jax.jit, static_argnames=("batch_tile",))
def mlp_forward(x, params, batch_tile=512):
    B, _ = x.shape
    w1, b1, w2, b2, w3, b3, w4, b4 = params

    # Effective batch tile: large enough to amortize per-step overhead, but no
    # bigger than the (sublane-rounded) batch itself; always a multiple of 8.
    tile = min(batch_tile, _round_up(B, SUBLANE))
    b_pad = _round_up(B, tile)
    grid = (b_pad // tile,)

    # Pre-pad everything to lane/sublane multiples once in the wrapper so the
    # kernel hot path only sees dense (…, 128) blocks. Padded weight rows/cols
    # and bias cols are zero, so padded activation columns stay exactly zero.
    xp = _pad2d(x, b_pad, LANE)
    w1p, w2p, w3p, w4p = (_pad2d(w, LANE, LANE) for w in (w1, w2, w3, w4))
    b1p, b2p, b3p, b4p = (_pad2d(b, 1, LANE) for b in (b1, b2, b3, b4))

    # Weights / biases are tiny -> full-array blocks, resident across grid steps.
    w_spec = pl.BlockSpec((LANE, LANE), lambda i: (0, 0))
    b_spec = pl.BlockSpec((1, LANE), lambda i: (0, 0))

    out_padded = pl.pallas_call(
        mlp_kernel,
        out_shape=jax.ShapeDtypeStruct((b_pad, LANE), jnp.float32),
        grid_spec=pltpu.PrefetchScalarGridSpec(
            num_scalar_prefetch=0,
            grid=grid,
            in_specs=[
                pl.BlockSpec((tile, LANE), lambda i: (i, 0)),  # x tile
                w_spec, b_spec,
                w_spec, b_spec,
                w_spec, b_spec,
                w_spec, b_spec,
            ],
            # Lane-dense output block (tile, 128); true result is column 0.
            out_specs=pl.BlockSpec((tile, LANE), lambda i: (i, 0)),
        ),
        compiler_params=pltpu.CompilerParams(
            dimension_semantics=("parallel",)),
    )(xp, w1p, b1p, w2p, b2p, w3p, b3p, w4p, b4p)

    return out_padded[:B, :OUTPUT_DIM]


def init_linear(key, fan_in, fan_out):
    # Deterministic init mimicking nn.Linear's default U(-1/sqrt(fan_in), +1/sqrt(fan_in)).
    kw, kb = jax.random.split(key)
    bound = 1.0 / jnp.sqrt(jnp.float32(fan_in))
    w = jax.random.uniform(kw, (fan_in, fan_out), jnp.float32, -bound, bound)
    b = jax.random.uniform(kb, (1, fan_out), jnp.float32, -bound, bound)
    return w, b


def reference_forward(x, params):
    w1, b1, w2, b2, w3, b3, w4, b4 = params
    h = x @ w1 + b1
    h = jax.nn.relu(h @ w2 + b2)
    h = jax.nn.relu(h @ w3 + b3)
    h = jax.nn.relu(h @ w4 + b4)
    return h


if __name__ == "__main__":
    key = jax.random.PRNGKey(0)
    k_x, k1, k2, k3, k4 = jax.random.split(key, 5)

    B = 16  # small demo batch (any B works: wrapper pads with cdiv-style tiling)
    x = jax.random.normal(k_x, (B, INPUT_DIM), jnp.float32)

    w1, b1 = init_linear(k1, INPUT_DIM, H1)
    w2, b2 = init_linear(k2, H1, H2)
    w3, b3 = init_linear(k3, H2, H3)
    w4, b4 = init_linear(k4, H3, OUTPUT_DIM)
    params = (w1, b1, w2, b2, w3, b3, w4, b4)

    out = mlp_forward(x, params)
    jax.block_until_ready(out)

    ref = reference_forward(x, params)
    assert out.shape == (B, OUTPUT_DIM)
    assert jnp.allclose(out, ref, atol=1e-5, rtol=1e-5)

    # Also exercise a non-divisible / larger batch to validate the tiling path.
    B2 = 1003
    x2 = jax.random.normal(k_x, (B2, INPUT_DIM), jnp.float32)
    out2 = mlp_forward(x2, params)
    jax.block_until_ready(out2)
    ref2 = reference_forward(x2, params)
    assert out2.shape == (B2, OUTPUT_DIM)
    assert jnp.allclose(out2, ref2, atol=1e-5, rtol=1e-5)

    print("KERNEL_OK")
</pallas_src>

<mosaic_0001>
module attributes {stable_mosaic.version = 11 : i64} {
  func.func @mlp_kernel(%arg0: i32, %arg1: memref<16x128xf32, #tpu.memory_space<vmem>>, %arg2: memref<128x128xf32, #tpu.memory_space<vmem>>, %arg3: memref<1x128xf32, #tpu.memory_space<vmem>>, %arg4: memref<128x128xf32, #tpu.memory_space<vmem>>, %arg5: memref<1x128xf32, #tpu.memory_space<vmem>>, %arg6: memref<128x128xf32, #tpu.memory_space<vmem>>, %arg7: memref<1x128xf32, #tpu.memory_space<vmem>>, %arg8: memref<128x128xf32, #tpu.memory_space<vmem>>, %arg9: memref<1x128xf32, #tpu.memory_space<vmem>>, %arg10: memref<16x128xf32, #tpu.memory_space<vmem>>) attributes {dimension_semantics = [#tpu.dimension_semantics<parallel>], iteration_bounds = array<i64: 1>, scalar_prefetch = 0 : i64, scratch_operands = 0 : i64, tpu.core_type = #tpu.core_type<tc>, window_params = [{transform_indices = @transform_0, window_bounds = array<i64: 16, 128>}, {pipeline_mode = #tpu.pipeline_mode<synchronous>, transform_indices = @transform_1, window_bounds = array<i64: 128, 128>}, {pipeline_mode = #tpu.pipeline_mode<synchronous>, transform_indices = @transform_2, window_bounds = array<i64: 1, 128>}, {pipeline_mode = #tpu.pipeline_mode<synchronous>, transform_indices = @transform_3, window_bounds = array<i64: 128, 128>}, {pipeline_mode = #tpu.pipeline_mode<synchronous>, transform_indices = @transform_4, window_bounds = array<i64: 1, 128>}, {pipeline_mode = #tpu.pipeline_mode<synchronous>, transform_indices = @transform_5, window_bounds = array<i64: 128, 128>}, {pipeline_mode = #tpu.pipeline_mode<synchronous>, transform_indices = @transform_6, window_bounds = array<i64: 1, 128>}, {pipeline_mode = #tpu.pipeline_mode<synchronous>, transform_indices = @transform_7, window_bounds = array<i64: 128, 128>}, {pipeline_mode = #tpu.pipeline_mode<synchronous>, transform_indices = @transform_8, window_bounds = array<i64: 1, 128>}, {transform_indices = @transform_9, window_bounds = array<i64: 16, 128>}]} {
    %c0 = arith.constant 0 : index
    %c0_0 = arith.constant 0 : index
    %0 = vector.load %arg1[%c0, %c0_0] : memref<16x128xf32, #tpu.memory_space<vmem>>, vector<16x128xf32>
    %c0_1 = arith.constant 0 : index
    %c0_2 = arith.constant 0 : index
    %1 = vector.load %arg2[%c0_1, %c0_2] : memref<128x128xf32, #tpu.memory_space<vmem>>, vector<128x128xf32>
    %cst = arith.constant dense<0.000000e+00> : vector<16x128xf32>
    %2 = tpu.matmul %0, %1, %cst {dimension_numbers = #tpu.dot_dimension_numbers<[1], [0], [0], [1], [0, 0, 1, 1], [], []>} : vector<16x128xf32>, vector<128x128xf32>, vector<16x128xf32> -> vector<16x128xf32>
    %c0_3 = arith.constant 0 : index
    %c0_4 = arith.constant 0 : index
    %3 = vector.load %arg3[%c0_3, %c0_4] : memref<1x128xf32, #tpu.memory_space<vmem>>, vector<1x128xf32>
    %4 = vector.broadcast %3 : vector<1x128xf32> to vector<16x128xf32>
    %5 = arith.addf %2, %4 : vector<16x128xf32>
    %c0_5 = arith.constant 0 : index
    %c0_6 = arith.constant 0 : index
    %6 = vector.load %arg4[%c0_5, %c0_6] : memref<128x128xf32, #tpu.memory_space<vmem>>, vector<128x128xf32>
    %cst_7 = arith.constant dense<0.000000e+00> : vector<16x128xf32>
    %7 = tpu.matmul %5, %6, %cst_7 {dimension_numbers = #tpu.dot_dimension_numbers<[1], [0], [0], [1], [0, 0, 1, 1], [], []>} : vector<16x128xf32>, vector<128x128xf32>, vector<16x128xf32> -> vector<16x128xf32>
    %c0_8 = arith.constant 0 : index
    %c0_9 = arith.constant 0 : index
    %8 = vector.load %arg5[%c0_8, %c0_9] : memref<1x128xf32, #tpu.memory_space<vmem>>, vector<1x128xf32>
    %9 = vector.broadcast %8 : vector<1x128xf32> to vector<16x128xf32>
    %10 = arith.addf %7, %9 : vector<16x128xf32>
    %cst_10 = arith.constant 0.000000e+00 : f32
    %11 = vector.broadcast %cst_10 : f32 to vector<16x128xf32>
    %12 = arith.maximumf %10, %11 : vector<16x128xf32>
    %c0_11 = arith.constant 0 : index
    %c0_12 = arith.constant 0 : index
    %13 = vector.load %arg6[%c0_11, %c0_12] : memref<128x128xf32, #tpu.memory_space<vmem>>, vector<128x128xf32>
    %cst_13 = arith.constant dense<0.000000e+00> : vector<16x128xf32>
    %14 = tpu.matmul %12, %13, %cst_13 {dimension_numbers = #tpu.dot_dimension_numbers<[1], [0], [0], [1], [0, 0, 1, 1], [], []>} : vector<16x128xf32>, vector<128x128xf32>, vector<16x128xf32> -> vector<16x128xf32>
    %c0_14 = arith.constant 0 : index
    %c0_15 = arith.constant 0 : index
    %15 = vector.load %arg7[%c0_14, %c0_15] : memref<1x128xf32, #tpu.memory_space<vmem>>, vector<1x128xf32>
    %16 = vector.broadcast %15 : vector<1x128xf32> to vector<16x128xf32>
    %17 = arith.addf %14, %16 : vector<16x128xf32>
    %cst_16 = arith.constant 0.000000e+00 : f32
    %18 = vector.broadcast %cst_16 : f32 to vector<16x128xf32>
    %19 = arith.maximumf %17, %18 : vector<16x128xf32>
    %c0_17 = arith.constant 0 : index
    %c0_18 = arith.constant 0 : index
    %20 = vector.load %arg8[%c0_17, %c0_18] : memref<128x128xf32, #tpu.memory_space<vmem>>, vector<128x128xf32>
    %cst_19 = arith.constant dense<0.000000e+00> : vector<16x128xf32>
    %21 = tpu.matmul %19, %20, %cst_19 {dimension_numbers = #tpu.dot_dimension_numbers<[1], [0], [0], [1], [0, 0, 1, 1], [], []>} : vector<16x128xf32>, vector<128x128xf32>, vector<16x128xf32> -> vector<16x128xf32>
    %c0_20 = arith.constant 0 : index
    %c0_21 = arith.constant 0 : index
    %22 = vector.load %arg9[%c0_20, %c0_21] : memref<1x128xf32, #tpu.memory_space<vmem>>, vector<1x128xf32>
    %23 = vector.broadcast %22 : vector<1x128xf32> to vector<16x128xf32>
    %24 = arith.addf %21, %23 : vector<16x128xf32>
    %cst_22 = arith.constant 0.000000e+00 : f32
    %25 = vector.broadcast %cst_22 : f32 to vector<16x128xf32>
    %26 = arith.maximumf %24, %25 : vector<16x128xf32>
    %c0_23 = arith.constant 0 : index
    %c0_24 = arith.constant 0 : index
    %27 = vector.load %arg10[%c0_23, %c0_24] : memref<16x128xf32, #tpu.memory_space<vmem>>, vector<16x128xf32>
    tpu.vector_store %arg10[%c0_23, %c0_24], %26 {strides = array<i32>} : memref<16x128xf32, #tpu.memory_space<vmem>>, vector<16x128xf32>,
    return
  }
  func.func @transform_0(%arg0: i32) -> (i32, i32) {
    %c0_i32 = arith.constant 0 : i32
    %c0_i32_0 = arith.constant 0 : i32
    return %arg0, %c0_i32 : i32, i32
  }
  func.func @transform_1(%arg0: i32) -> (i32, i32) {
    %c0_i32 = arith.constant 0 : i32
    %c0_i32_0 = arith.constant 0 : i32
    %c0_i32_1 = arith.constant 0 : i32
    return %c0_i32, %c0_i32_0 : i32, i32
  }
  func.func @transform_2(%arg0: i32) -> (i32, i32) {
    %c0_i32 = arith.constant 0 : i32
    %c0_i32_0 = arith.constant 0 : i32
    %c0_i32_1 = arith.constant 0 : i32
    return %c0_i32, %c0_i32_0 : i32, i32
  }
  func.func @transform_3(%arg0: i32) -> (i32, i32) {
    %c0_i32 = arith.constant 0 : i32
    %c0_i32_0 = arith.constant 0 : i32
    %c0_i32_1 = arith.constant 0 : i32
    return %c0_i32, %c0_i32_0 : i32, i32
  }
  func.func @transform_4(%arg0: i32) -> (i32, i32) {
    %c0_i32 = arith.constant 0 : i32
    %c0_i32_0 = arith.constant 0 : i32
    %c0_i32_1 = arith.constant 0 : i32
    return %c0_i32, %c0_i32_0 : i32, i32
  }
  func.func @transform_5(%arg0: i32) -> (i32, i32) {
    %c0_i32 = arith.constant 0 : i32
    %c0_i32_0 = arith.constant 0 : i32
    %c0_i32_1 = arith.constant 0 : i32
    return %c0_i32, %c0_i32_0 : i32, i32
  }
  func.func @transform_6(%arg0: i32) -> (i32, i32) {
    %c0_i32 = arith.constant 0 : i32
    %c0_i32_0 = arith.constant 0 : i32
    %c0_i32_1 = arith.constant 0 : i32
    return %c0_i32, %c0_i32_0 : i32, i32
  }
  func.func @transform_7(%arg0: i32) -> (i32, i32) {
    %c0_i32 = arith.constant 0 : i32
    %c0_i32_0 = arith.constant 0 : i32
    %c0_i32_1 = arith.constant 0 : i32
    return %c0_i32, %c0_i32_0 : i32, i32
  }
  func.func @transform_8(%arg0: i32) -> (i32, i32) {
    %c0_i32 = arith.constant 0 : i32
    %c0_i32_0 = arith.constant 0 : i32
    %c0_i32_1 = arith.constant 0 : i32
    return %c0_i32, %c0_i32_0 : i32, i32
  }
  func.func @transform_9(%arg0: i32) -> (i32, i32) {
    %c0_i32 = arith.constant 0 : i32
    %c0_i32_0 = arith.constant 0 : i32
    return %arg0, %c0_i32 : i32, i32
  }
}

</mosaic_0001>

<llo_original>
// kernel: mlp_forward.1
$region0: #{mlp_forward.1}
  #allocation0 [shape = 'u32[]', space=smem, size = 0x4, offset = 0x4, fixed_abs, tag = 'smem constant byte address 0x4 - core index']
  #allocation1 [shape = 'u32[144,128]{1,0:T(1,128)}', space=vmem, size = 0x12000, scoped, tag = 'internal scratch']
  %s0 = inlined_call_operand.vmem [shape: f32[16,128], index: 0, kind: input, shape index: {}]
  %s1 = inlined_call_operand.vmem [shape: f32[128,128], index: 1, kind: input, shape index: {}]
  %s2 = inlined_call_operand.vmem [shape: f32[1,128], index: 2, kind: input, shape index: {}]
  %s3 = inlined_call_operand.vmem [shape: f32[128,128], index: 3, kind: input, shape index: {}]
  %s4 = inlined_call_operand.vmem [shape: f32[1,128], index: 4, kind: input, shape index: {}]
  %s5 = inlined_call_operand.vmem [shape: f32[128,128], index: 5, kind: input, shape index: {}]
  %s6 = inlined_call_operand.vmem [shape: f32[1,128], index: 6, kind: input, shape index: {}]
  %s7 = inlined_call_operand.vmem [shape: f32[128,128], index: 7, kind: input, shape index: {}]
  %s8 = inlined_call_operand.vmem [shape: f32[1,128], index: 8, kind: input, shape index: {}]
  %s9 = inlined_call_operand.vmem [shape: f32[16,128], index: 9, kind: output, shape index: {}]
  %s10 = sld [smem:[#allocation0]]
  $region46: #{mlp_forward.1} parent=0
    _
  %s12 = ssub.s32 1, %s10
  %s13 = scalar_select 0, %s12, %s10
  // Predicated region
  $region2: #{mlp_forward.1} parent=0 // pred_check
    _
  $region3: #{mlp_forward.1} parent=0 // pred_check_branch
    %15 = sbr.rel (0) target = $region5
  $region4: #{mlp_forward.1} parent=0 // pred_region
    _
  $region5: #{mlp_forward.1} parent=0 // pred_fallthru
    _
  // Predicated region
  $region6: #{mlp_forward.1} parent=0 // pred_check
    _
  $region7: #{mlp_forward.1} parent=0 // pred_check_branch
    %17 = sbr.rel (0) target = $region9
  $region8: #{mlp_forward.1} parent=0 // pred_region
    _
  $region9: #{mlp_forward.1} parent=0 // pred_fallthru
    _
  // Predicated region
  $region10: #{mlp_forward.1} parent=0 // pred_check
    _
  $region11: #{mlp_forward.1} parent=0 // pred_check_branch
    %19 = sbr.rel (0) target = $region13
  $region12: #{mlp_forward.1} parent=0 // pred_region
    _
  $region13: #{mlp_forward.1} parent=0 // pred_fallthru
    _
  // Predicated region
  $region14: #{mlp_forward.1} parent=0 // pred_check
    _
  $region15: #{mlp_forward.1} parent=0 // pred_check_branch
    %21 = sbr.rel (0) target = $region17
  $region16: #{mlp_forward.1} parent=0 // pred_region
    _
  $region17: #{mlp_forward.1} parent=0 // pred_fallthru
    _
  // Predicated region
  $region18: #{mlp_forward.1} parent=0 // pred_check
    _
  $region19: #{mlp_forward.1} parent=0 // pred_check_branch
    %23 = sbr.rel (0) target = $region21
  $region20: #{mlp_forward.1} parent=0 // pred_region
    _
  $region21: #{mlp_forward.1} parent=0 // pred_fallthru
    _
  // Predicated region
  $region22: #{mlp_forward.1} parent=0 // pred_check
    _
  $region23: #{mlp_forward.1} parent=0 // pred_check_branch
    %25 = sbr.rel (0) target = $region25
  $region24: #{mlp_forward.1} parent=0 // pred_region
    _
  $region25: #{mlp_forward.1} parent=0 // pred_fallthru
    _
  // Predicated region
  $region26: #{mlp_forward.1} parent=0 // pred_check
    _
  $region27: #{mlp_forward.1} parent=0 // pred_check_branch
    %27 = sbr.rel (0) target = $region29
  $region28: #{mlp_forward.1} parent=0 // pred_region
    _
  $region29: #{mlp_forward.1} parent=0 // pred_fallthru
    _
  // Predicated region
  $region30: #{mlp_forward.1} parent=0 // pred_check
    _
  $region31: #{mlp_forward.1} parent=0 // pred_check_branch
    %29 = sbr.rel (0) target = $region33
  $region32: #{mlp_forward.1} parent=0 // pred_region
    _
  $region33: #{mlp_forward.1} parent=0 // pred_fallthru
    _
  // Predicated region
  $region34: #{mlp_forward.1} parent=0 // pred_check
    _
  $region35: #{mlp_forward.1} parent=0 // pred_check_branch
    %31 = sbr.rel (0) target = $region37
  $region36: #{mlp_forward.1} parent=0 // pred_region
    _
  $region37: #{mlp_forward.1} parent=0 // pred_fallthru
    _
  %v32 = vld [vmem:[%s0] sm:$0xff]
  %v33 = vld [vmem:[%s0 + $0x8] sm:$0xff]
  %v34 = vld [vmem:[%s1] sm:$0xff]
  %v35 = vld [vmem:[%s1 + $0x8] sm:$0xff]
  %v36 = vld [vmem:[%s1 + $0x10] sm:$0xff]
  %v37 = vld [vmem:[%s1 + $0x18] sm:$0xff]
  %v38 = vld [vmem:[%s1 + $0x20] sm:$0xff]
  %v39 = vld [vmem:[%s1 + $0x28] sm:$0xff]
  %v40 = vld [vmem:[%s1 + $0x30] sm:$0xff]
  %v41 = vld [vmem:[%s1 + $0x38] sm:$0xff]
  %v42 = vld [vmem:[%s1 + $0x40] sm:$0xff]
  %v43 = vld [vmem:[%s1 + $0x48] sm:$0xff]
  %v44 = vld [vmem:[%s1 + $0x50] sm:$0xff]
  %v45 = vld [vmem:[%s1 + $0x58] sm:$0xff]
  %v46 = vld [vmem:[%s1 + $0x60] sm:$0xff]
  %v47 = vld [vmem:[%s1 + $0x68] sm:$0xff]
  %v48 = vld [vmem:[%s1 + $0x70] sm:$0xff]
  %v49 = vld [vmem:[%s1 + $0x78] sm:$0xff]
  %v50 = vld [vmem:[%s2] sm:$0x1]
  %v52 = vlaneseq
  %v53 = vshrl.u32 %v52, 7
  %v54 = vsub.s32 0, %v53
  %v55 = vrot.slane %v50, %v54
  %57 = vmatprep.subr.mxu0 0.0
  %58 = vmatpush1.msra.mxu0 %v34
  %59 = vmatprep.subr.mxu0 0.0
  %60 = vmatpush1.msra.mxu0 %v35
  %61 = vmatprep.subr.mxu0 0.0
  %62 = vmatpush1.msra.mxu0 %v36
  %63 = vmatprep.subr.mxu0 0.0
  %64 = vmatpush1.msra.mxu0 %v37
  %65 = vmatprep.subr.mxu0 0.0
  %66 = vmatpush1.msra.mxu0 %v38
  %67 = vmatprep.subr.mxu0 0.0
  %68 = vmatpush1.msra.mxu0 %v39
  %69 = vmatprep.subr.mxu0 0.0
  %70 = vmatpush1.msra.mxu0 %v40
  %71 = vmatprep.subr.mxu0 0.0
  %72 = vmatpush1.msra.mxu0 %v41
  %73 = vmatprep.subr.mxu0 0.0
  %74 = vmatpush1.msra.mxu0 %v42
  %75 = vmatprep.subr.mxu0 0.0
  %76 = vmatpush1.msra.mxu0 %v43
  %77 = vmatprep.subr.mxu0 0.0
  %78 = vmatpush1.msra.mxu0 %v44
  %79 = vmatprep.subr.mxu0 0.0
  %80 = vmatpush1.msra.mxu0 %v45
  %81 = vmatprep.subr.mxu0 0.0
  %82 = vmatpush1.msra.mxu0 %v46
  %83 = vmatprep.subr.mxu0 0.0
  %84 = vmatpush1.msra.mxu0 %v47
  %85 = vmatprep.subr.mxu0 0.0
  %86 = vmatpush1.msra.mxu0 %v48
  %87 = vmatprep.subr.mxu0 0.0
  %88 = vmatpush1.msra.mxu0 %v49
  %89 = vmatprep.subr.mxu0 0.0
  %90 = vmatpush1.msra.mxu0 0.0
  %91 = vmatprep.subr.mxu0 0.0
  %92 = vmatpush1.msra.mxu0 0.0
  %93 = vmatprep.subr.mxu0 0.0
  %94 = vmatpush1.msra.mxu0 0.0
  %95 = vmatprep.subr.mxu0 0.0
  %96 = vmatpush1.msra.mxu0 0.0
  %97 = vmatprep.subr.mxu0 0.0
  %98 = vmatpush1.msra.mxu0 0.0
  %99 = vmatprep.subr.mxu0 0.0
  %100 = vmatpush1.msra.mxu0 0.0
  %101 = vmatprep.subr.mxu0 0.0
  %102 = vmatpush1.msra.mxu0 0.0
  %103 = vmatprep.subr.mxu0 0.0
  %104 = vmatpush1.msra.mxu0 0.0
  %105 = vmatprep.subr.mxu0 0.0
  %106 = vmatpush1.msra.mxu0 0.0
  %107 = vmatprep.subr.mxu0 0.0
  %108 = vmatpush1.msra.mxu0 0.0
  %109 = vmatprep.subr.mxu0 0.0
  %110 = vmatpush1.msra.mxu0 0.0
  %111 = vmatprep.subr.mxu0 0.0
  %112 = vmatpush1.msra.mxu0 0.0
  %113 = vmatprep.subr.mxu0 0.0
  %114 = vmatpush1.msra.mxu0 0.0
  %115 = vmatprep.subr.mxu0 0.0
  %116 = vmatpush1.msra.mxu0 0.0
  %117 = vmatprep.subr.mxu0 0.0
  %118 = vmatpush1.msra.mxu0 0.0
  %119 = vmatprep.subr.mxu0 0.0
  %120 = vmatpush1.msra.mxu0 0.0
  %121 = vmatprep.mubr.f32.mxu0 0.0
  %122 = vmatmul.mubr.f32.gmra.mrb[0].mxu0 %v32
  %v123 = vpop.f32.mrb[0].mxu0
  %v124 = vadd.f32 %v55, %v123
  %v125 = vpop.f32.mrb[0].mxu0
  %126 = vmatprep.mubr.f32.mxu0 0.0
  %127 = vmatmul.mubr.f32.gmra.mrb[0].mxu0 %v33
  %v128 = vpop.f32.mrb[0].mxu0
  %v129 = vadd.f32 %v55, %v128
  %v130 = vpop.f32.mrb[0].mxu0
  %131 = vdwg.mxu0
  %v132 = vld [vmem:[%s3] sm:$0xff]
  %v133 = vld [vmem:[%s3 + $0x8] sm:$0xff]
  %v134 = vld [vmem:[%s3 + $0x10] sm:$0xff]
  %v135 = vld [vmem:[%s3 + $0x18] sm:$0xff]
  %v136 = vld [vmem:[%s3 + $0x20] sm:$0xff]
  %v137 = vld [vmem:[%s3 + $0x28] sm:$0xff]
  %v138 = vld [vmem:[%s3 + $0x30] sm:$0xff]
  %v139 = vld [vmem:[%s3 + $0x38] sm:$0xff]
  %v140 = vld [vmem:[%s3 + $0x40] sm:$0xff]
  %v141 = vld [vmem:[%s3 + $0x48] sm:$0xff]
  %v142 = vld [vmem:[%s3 + $0x50] sm:$0xff]
  %v143 = vld [vmem:[%s3 + $0x58] sm:$0xff]
  %v144 = vld [vmem:[%s3 + $0x60] sm:$0xff]
  %v145 = vld [vmem:[%s3 + $0x68] sm:$0xff]
  %v146 = vld [vmem:[%s3 + $0x70] sm:$0xff]
  %v147 = vld [vmem:[%s3 + $0x78] sm:$0xff]
  %v148 = vld [vmem:[%s4] sm:$0x1]
  %v150 = vlaneseq
  %v151 = vshrl.u32 %v150, 7
  %v152 = vsub.s32 0, %v151
  %v153 = vrot.slane %v148, %v152
  %155 = vmatprep.subr.mxu0 0.0
  %156 = vmatpush1.msra.mxu0 %v132
  %157 = vmatprep.subr.mxu0 0.0
  %158 = vmatpush1.msra.mxu0 %v133
  %159 = vmatprep.subr.mxu0 0.0
  %160 = vmatpush1.msra.mxu0 %v134
  %161 = vmatprep.subr.mxu0 0.0
  %162 = vmatpush1.msra.mxu0 %v135
  %163 = vmatprep.subr.mxu0 0.0
  %164 = vmatpush1.msra.mxu0 %v136
  %165 = vmatprep.subr.mxu0 0.0
  %166 = vmatpush1.msra.mxu0 %v137
  %167 = vmatprep.subr.mxu0 0.0
  %168 = vmatpush1.msra.mxu0 %v138
  %169 = vmatprep.subr.mxu0 0.0
  %170 = vmatpush1.msra.mxu0 %v139
  %171 = vmatprep.subr.mxu0 0.0
  %172 = vmatpush1.msra.mxu0 %v140
  %173 = vmatprep.subr.mxu0 0.0
  %174 = vmatpush1.msra.mxu0 %v141
  %175 = vmatprep.subr.mxu0 0.0
  %176 = vmatpush1.msra.mxu0 %v142
  %177 = vmatprep.subr.mxu0 0.0
  %178 = vmatpush1.msra.mxu0 %v143
  %179 = vmatprep.subr.mxu0 0.0
  %180 = vmatpush1.msra.mxu0 %v144
  %181 = vmatprep.subr.mxu0 0.0
  %182 = vmatpush1.msra.mxu0 %v145
  %183 = vmatprep.subr.mxu0 0.0
  %184 = vmatpush1.msra.mxu0 %v146
  %185 = vmatprep.subr.mxu0 0.0
  %186 = vmatpush1.msra.mxu0 %v147
  %187 = vmatprep.subr.mxu0 0.0
  %188 = vmatpush1.msra.mxu0 0.0
  %189 = vmatprep.subr.mxu0 0.0
  %190 = vmatpush1.msra.mxu0 0.0
  %191 = vmatprep.subr.mxu0 0.0
  %192 = vmatpush1.msra.mxu0 0.0
  %193 = vmatprep.subr.mxu0 0.0
  %194 = vmatpush1.msra.mxu0 0.0
  %195 = vmatprep.subr.mxu0 0.0
  %196 = vmatpush1.msra.mxu0 0.0
  %197 = vmatprep.subr.mxu0 0.0
  %198 = vmatpush1.msra.mxu0 0.0
  %199 = vmatprep.subr.mxu0 0.0
  %200 = vmatpush1.msra.mxu0 0.0
  %201 = vmatprep.subr.mxu0 0.0
  %202 = vmatpush1.msra.mxu0 0.0
  %203 = vmatprep.subr.mxu0 0.0
  %204 = vmatpush1.msra.mxu0 0.0
  %205 = vmatprep.subr.mxu0 0.0
  %206 = vmatpush1.msra.mxu0 0.0
  %207 = vmatprep.subr.mxu0 0.0
  %208 = vmatpush1.msra.mxu0 0.0
  %209 = vmatprep.subr.mxu0 0.0
  %210 = vmatpush1.msra.mxu0 0.0
  %211 = vmatprep.subr.mxu0 0.0
  %212 = vmatpush1.msra.mxu0 0.0
  %213 = vmatprep.subr.mxu0 0.0
  %214 = vmatpush1.msra.mxu0 0.0
  %215 = vmatprep.subr.mxu0 0.0
  %216 = vmatpush1.msra.mxu0 0.0
  %217 = vmatprep.subr.mxu0 0.0
  %218 = vmatpush1.msra.mxu0 0.0
  %219 = vmatprep.mubr.f32.mxu0 0.0
  %220 = vmatmul.mubr.f32.gmra.mrb[0].mxu0 %v124
  %v221 = vpop.f32.mrb[0].mxu0
  %v222 = vadd.f32 %v153, %v221
  %v223 = vpop.f32.mrb[0].mxu0
  %224 = vmatprep.mubr.f32.mxu0 0.0
  %225 = vmatmul.mubr.f32.gmra.mrb[0].mxu0 %v129
  %v226 = vpop.f32.mrb[0].mxu0
  %v227 = vadd.f32 %v153, %v226
  %v228 = vpop.f32.mrb[0].mxu0
  %229 = vdwg.mxu0
  %v230 = vmax.f32 %v222, 0.0
  %v231 = vmax.f32 %v227, 0.0
  %v232 = vld [vmem:[%s5] sm:$0xff]
  %v233 = vld [vmem:[%s5 + $0x8] sm:$0xff]
  %v234 = vld [vmem:[%s5 + $0x10] sm:$0xff]
  %v235 = vld [vmem:[%s5 + $0x18] sm:$0xff]
  %v236 = vld [vmem:[%s5 + $0x20] sm:$0xff]
  %v237 = vld [vmem:[%s5 + $0x28] sm:$0xff]
  %v238 = vld [vmem:[%s5 + $0x30] sm:$0xff]
  %v239 = vld [vmem:[%s5 + $0x38] sm:$0xff]
  %v240 = vld [vmem:[%s5 + $0x40] sm:$0xff]
  %v241 = vld [vmem:[%s5 + $0x48] sm:$0xff]
  %v242 = vld [vmem:[%s5 + $0x50] sm:$0xff]
  %v243 = vld [vmem:[%s5 + $0x58] sm:$0xff]
  %v244 = vld [vmem:[%s5 + $0x60] sm:$0xff]
  %v245 = vld [vmem:[%s5 + $0x68] sm:$0xff]
  %v246 = vld [vmem:[%s5 + $0x70] sm:$0xff]
  %v247 = vld [vmem:[%s5 + $0x78] sm:$0xff]
  %v248 = vld [vmem:[%s6] sm:$0x1]
  %v250 = vlaneseq
  %v251 = vshrl.u32 %v250, 7
  %v252 = vsub.s32 0, %v251
  %v253 = vrot.slane %v248, %v252
  %255 = vmatprep.subr.mxu0 0.0
  %256 = vmatpush1.msra.mxu0 %v232
  %257 = vmatprep.subr.mxu0 0.0
  %258 = vmatpush1.msra.mxu0 %v233
  %259 = vmatprep.subr.mxu0 0.0
  %260 = vmatpush1.msra.mxu0 %v234
  %261 = vmatprep.subr.mxu0 0.0
  %262 = vmatpush1.msra.mxu0 %v235
  %263 = vmatprep.subr.mxu0 0.0
  %264 = vmatpush1.msra.mxu0 %v236
  %265 = vmatprep.subr.mxu0 0.0
  %266 = vmatpush1.msra.mxu0 %v237
  %267 = vmatprep.subr.mxu0 0.0
  %268 = vmatpush1.msra.mxu0 %v238
  %269 = vmatprep.subr.mxu0 0.0
  %270 = vmatpush1.msra.mxu0 %v239
  %271 = vmatprep.subr.mxu0 0.0
  %272 = vmatpush1.msra.mxu0 %v240
  %273 = vmatprep.subr.mxu0 0.0
  %274 = vmatpush1.msra.mxu0 %v241
  %275 = vmatprep.subr.mxu0 0.0
  %276 = vmatpush1.msra.mxu0 %v242
  %277 = vmatprep.subr.mxu0 0.0
  %278 = vmatpush1.msra.mxu0 %v243
  %279 = vmatprep.subr.mxu0 0.0
  %280 = vmatpush1.msra.mxu0 %v244
  %281 = vmatprep.subr.mxu0 0.0
  %282 = vmatpush1.msra.mxu0 %v245
  %283 = vmatprep.subr.mxu0 0.0
  %284 = vmatpush1.msra.mxu0 %v246
  %285 = vmatprep.subr.mxu0 0.0
  %286 = vmatpush1.msra.mxu0 %v247
  %287 = vmatprep.subr.mxu0 0.0
  %288 = vmatpush1.msra.mxu0 0.0
  %289 = vmatprep.subr.mxu0 0.0
  %290 = vmatpush1.msra.mxu0 0.0
  %291 = vmatprep.subr.mxu0 0.0
  %292 = vmatpush1.msra.mxu0 0.0
  %293 = vmatprep.subr.mxu0 0.0
  %294 = vmatpush1.msra.mxu0 0.0
  %295 = vmatprep.subr.mxu0 0.0
  %296 = vmatpush1.msra.mxu0 0.0
  %297 = vmatprep.subr.mxu0 0.0
  %298 = vmatpush1.msra.mxu0 0.0
  %299 = vmatprep.subr.mxu0 0.0
  %300 = vmatpush1.msra.mxu0 0.0
  %301 = vmatprep.subr.mxu0 0.0
  %302 = vmatpush1.msra.mxu0 0.0
  %303 = vmatprep.subr.mxu0 0.0
  %304 = vmatpush1.msra.mxu0 0.0
  %305 = vmatprep.subr.mxu0 0.0
  %306 = vmatpush1.msra.mxu0 0.0
  %307 = vmatprep.subr.mxu0 0.0
  %308 = vmatpush1.msra.mxu0 0.0
  %309 = vmatprep.subr.mxu0 0.0
  %310 = vmatpush1.msra.mxu0 0.0
  %311 = vmatprep.subr.mxu0 0.0
  %312 = vmatpush1.msra.mxu0 0.0
  %313 = vmatprep.subr.mxu0 0.0
  %314 = vmatpush1.msra.mxu0 0.0
  %315 = vmatprep.subr.mxu0 0.0
  %316 = vmatpush1.msra.mxu0 0.0
  %317 = vmatprep.subr.mxu0 0.0
  %318 = vmatpush1.msra.mxu0 0.0
  %319 = vmatprep.mubr.f32.mxu0 0.0
  %320 = vmatmul.mubr.f32.gmra.mrb[0].mxu0 %v230
  %v321 = vpop.f32.mrb[0].mxu0
  %v322 = vadd.f32 %v253, %v321
  %v323 = vpop.f32.mrb[0].mxu0
  %324 = vmatprep.mubr.f32.mxu0 0.0
  %325 = vmatmul.mubr.f32.gmra.mrb[0].mxu0 %v231
  %v326 = vpop.f32.mrb[0].mxu0
  %v327 = vadd.f32 %v253, %v326
  %v328 = vpop.f32.mrb[0].mxu0
  %329 = vdwg.mxu0
  %v330 = vmax.f32 %v322, 0.0
  %v331 = vmax.f32 %v327, 0.0
  %v332 = vld [vmem:[%s7] sm:$0xff]
  %v333 = vld [vmem:[%s7 + $0x8] sm:$0xff]
  %v334 = vld [vmem:[%s7 + $0x10] sm:$0xff]
  %v335 = vld [vmem:[%s7 + $0x18] sm:$0xff]
  %v336 = vld [vmem:[%s7 + $0x20] sm:$0xff]
  %v337 = vld [vmem:[%s7 + $0x28] sm:$0xff]
  %v338 = vld [vmem:[%s7 + $0x30] sm:$0xff]
  %v339 = vld [vmem:[%s7 + $0x38] sm:$0xff]
  %v340 = vld [vmem:[%s7 + $0x40] sm:$0xff]
  %v341 = vld [vmem:[%s7 + $0x48] sm:$0xff]
  %v342 = vld [vmem:[%s7 + $0x50] sm:$0xff]
  %v343 = vld [vmem:[%s7 + $0x58] sm:$0xff]
  %v344 = vld [vmem:[%s7 + $0x60] sm:$0xff]
  %v345 = vld [vmem:[%s7 + $0x68] sm:$0xff]
  %v346 = vld [vmem:[%s7 + $0x70] sm:$0xff]
  %v347 = vld [vmem:[%s7 + $0x78] sm:$0xff]
  %v348 = vld [vmem:[%s8] sm:$0x1]
  %v350 = vlaneseq
  %v351 = vshrl.u32 %v350, 7
  %v352 = vsub.s32 0, %v351
  %v353 = vrot.slane %v348, %v352
  %355 = vmatprep.subr.mxu0 0.0
  %356 = vmatpush1.msra.mxu0 %v332
  %357 = vmatprep.subr.mxu0 0.0
  %358 = vmatpush1.msra.mxu0 %v333
  %359 = vmatprep.subr.mxu0 0.0
  %360 = vmatpush1.msra.mxu0 %v334
  %361 = vmatprep.subr.mxu0 0.0
  %362 = vmatpush1.msra.mxu0 %v335
  %363 = vmatprep.subr.mxu0 0.0
  %364 = vmatpush1.msra.mxu0 %v336
  %365 = vmatprep.subr.mxu0 0.0
  %366 = vmatpush1.msra.mxu0 %v337
  %367 = vmatprep.subr.mxu0 0.0
  %368 = vmatpush1.msra.mxu0 %v338
  %369 = vmatprep.subr.mxu0 0.0
  %370 = vmatpush1.msra.mxu0 %v339
  %371 = vmatprep.subr.mxu0 0.0
  %372 = vmatpush1.msra.mxu0 %v340
  %373 = vmatprep.subr.mxu0 0.0
  %374 = vmatpush1.msra.mxu0 %v341
  %375 = vmatprep.subr.mxu0 0.0
  %376 = vmatpush1.msra.mxu0 %v342
  %377 = vmatprep.subr.mxu0 0.0
  %378 = vmatpush1.msra.mxu0 %v343
  %379 = vmatprep.subr.mxu0 0.0
  %380 = vmatpush1.msra.mxu0 %v344
  %381 = vmatprep.subr.mxu0 0.0
  %382 = vmatpush1.msra.mxu0 %v345
  %383 = vmatprep.subr.mxu0 0.0
  %384 = vmatpush1.msra.mxu0 %v346
  %385 = vmatprep.subr.mxu0 0.0
  %386 = vmatpush1.msra.mxu0 %v347
  %387 = vmatprep.subr.mxu0 0.0
  %388 = vmatpush1.msra.mxu0 0.0
  %389 = vmatprep.subr.mxu0 0.0
  %390 = vmatpush1.msra.mxu0 0.0
  %391 = vmatprep.subr.mxu0 0.0
  %392 = vmatpush1.msra.mxu0 0.0
  %393 = vmatprep.subr.mxu0 0.0
  %394 = vmatpush1.msra.mxu0 0.0
  %395 = vmatprep.subr.mxu0 0.0
  %396 = vmatpush1.msra.mxu0 0.0
  %397 = vmatprep.subr.mxu0 0.0
  %398 = vmatpush1.msra.mxu0 0.0
  %399 = vmatprep.subr.mxu0 0.0
  %400 = vmatpush1.msra.mxu0 0.0
  %401 = vmatprep.subr.mxu0 0.0
  %402 = vmatpush1.msra.mxu0 0.0
  %403 = vmatprep.subr.mxu0 0.0
  %404 = vmatpush1.msra.mxu0 0.0
  %405 = vmatprep.subr.mxu0 0.0
  %406 = vmatpush1.msra.mxu0 0.0
  %407 = vmatprep.subr.mxu0 0.0
  %408 = vmatpush1.msra.mxu0 0.0
  %409 = vmatprep.subr.mxu0 0.0
  %410 = vmatpush1.msra.mxu0 0.0
  %411 = vmatprep.subr.mxu0 0.0
  %412 = vmatpush1.msra.mxu0 0.0
  %413 = vmatprep.subr.mxu0 0.0
  %414 = vmatpush1.msra.mxu0 0.0
  %415 = vmatprep.subr.mxu0 0.0
  %416 = vmatpush1.msra.mxu0 0.0
  %417 = vmatprep.subr.mxu0 0.0
  %418 = vmatpush1.msra.mxu0 0.0
  %419 = vmatprep.mubr.f32.mxu0 0.0
  %420 = vmatmul.mubr.f32.gmra.mrb[0].mxu0 %v330
  %v421 = vpop.f32.mrb[0].mxu0
  %v422 = vadd.f32 %v353, %v421
  %v423 = vpop.f32.mrb[0].mxu0
  %424 = vmatprep.mubr.f32.mxu0 0.0
  %425 = vmatmul.mubr.f32.gmra.mrb[0].mxu0 %v331
  %v426 = vpop.f32.mrb[0].mxu0
  %v427 = vadd.f32 %v353, %v426
  %v428 = vpop.f32.mrb[0].mxu0
  %429 = vdwg.mxu0
  %v430 = vmax.f32 %v422, 0.0
  %v431 = vmax.f32 %v427, 0.0
  %432 = vst [vmem:[%s9] sm:$0xff] %v430
  %433 = vst [vmem:[%s9 + $0x8] sm:$0xff] %v431
  // Predicated region
  $region38: #{mlp_forward.1} parent=0 // pred_check
    _
  $region39: #{mlp_forward.1} parent=0 // pred_check_branch
    %435 = sbr.rel (0) target = $region41
  $region40: #{mlp_forward.1} parent=0 // pred_region
    _
  $region41: #{mlp_forward.1} parent=0 // pred_fallthru
    _
  // Predicated region
  $region42: #{mlp_forward.1} parent=0 // pred_check
    _
  $region43: #{mlp_forward.1} parent=0 // pred_check_branch
    %437 = sbr.rel (0) target = $region45
  $region44: #{mlp_forward.1} parent=0 // pred_region
    _
  $region45: #{mlp_forward.1} parent=0 // pred_fallthru
    _

</llo_original>
